<compile_context>
chip_gen: v5e
topology: v5e:2x2
jax: 0.10.0
libtpu: 0.0.40
codegen_flags: <defaults>
</compile_context>

<pallas_src>
import math
import functools

import jax
import jax.numpy as jnp
from jax.experimental import pallas as pl
from jax.experimental.pallas import tpu as pltpu


def _pos_enc_kernel(pos_ref, freq_ref, out_ref, *, half_dim, enc_dim):
    """One row-tile grid step.

    pos_ref:  (s_tile, 1) f32 fairseq positions (0 == zeroed embedding row).
    freq_ref: (1, half_dim) f32 inverse frequencies (resident constant).
    out_ref:  (s_tile, enc_dim) output rows.
    """
    pos = pos_ref[...]                                   # (s_tile, 1)
    arg = pos * freq_ref[...]                            # (s_tile, half_dim)

    if enc_dim != 2 * half_dim:
        # Odd encoding_dim: zero the trailing pad column (full-block init,
        # then overwrite the sin/cos halves below).
        out_ref[...] = jnp.zeros_like(out_ref)

    out_ref[:, :half_dim] = jnp.sin(arg).astype(out_ref.dtype)
    # Embedding row 0 is zeroed; sin(0)=0 already, so only the cos half needs
    # masking where position == 0 (pad tokens when padding_idx == 0, and the
    # wrapper-side row padding).
    cos_part = jnp.where(pos != 0.0, jnp.cos(arg), 0.0)
    out_ref[:, half_dim:2 * half_dim] = cos_part.astype(out_ref.dtype)


def _pick_row_tile(total_rows, enc_dim, out_itemsize, max_block_bytes=4 << 20):
    """Largest power-of-two row tile in [8, 1024] whose output block fits the
    VMEM budget, without padding a tiny input up to a huge block."""
    rows_cap = max(8, min(1024, max_block_bytes // max(1, enc_dim * out_itemsize)))
    rows_needed = max(8, ((total_rows + 7) // 8) * 8)
    t = 8
    while t * 2 <= rows_cap and t * 2 <= rows_needed:
        t *= 2
    return t


def _encode_positions(positions, encoding_dim, out_dtype):
    """positions: (bsz, seq_len) int32 fairseq positions -> (bsz, seq_len, D)."""
    bsz, seq_len = positions.shape
    half_dim = encoding_dim // 2
    # Guard half_dim == 1 against divide-by-zero (same latent issue as PyTorch).
    emb_scale = math.log(10000.0) / max(half_dim - 1, 1)
    freq = jnp.exp(
        jnp.arange(half_dim, dtype=jnp.float32) * (-emb_scale)).reshape(1, half_dim)

    total = bsz * seq_len
    out_itemsize = jnp.dtype(out_dtype).itemsize
    s_tile = _pick_row_tile(total, encoding_dim, out_itemsize)
    padded = ((total + s_tile - 1) // s_tile) * s_tile
    num_tiles = padded // s_tile

    pos_col = positions.reshape(total, 1).astype(jnp.float32)
    if padded != total:
        # Pad rows get position 0 -> zero output rows; sliced off below.
        pos_col = jnp.pad(pos_col, ((0, padded - total), (0, 0)))

    kernel = functools.partial(
        _pos_enc_kernel, half_dim=half_dim, enc_dim=encoding_dim)

    cost = pl.CostEstimate(
        flops=int(4 * padded * half_dim),
        transcendentals=int(2 * padded * half_dim),
        bytes_accessed=int(padded * 4 + half_dim * 4
                           + padded * encoding_dim * out_itemsize),
    )

    out_flat = pl.pallas_call(
        kernel,
        out_shape=jax.ShapeDtypeStruct((padded, encoding_dim), out_dtype),
        grid=(num_tiles,),
        in_specs=[
            pl.BlockSpec((s_tile, 1), lambda i: (i, 0)),          # positions column
            pl.BlockSpec((1, half_dim), lambda i: (0, 0)),        # resident freq row
        ],
        out_specs=pl.BlockSpec((s_tile, encoding_dim), lambda i: (i, 0)),
        compiler_params=pltpu.CompilerParams(
            dimension_semantics=("parallel",),
            vmem_limit_bytes=32 * 1024 * 1024),
        cost_estimate=cost,
    )(pos_col, freq)

    return out_flat[:total].reshape(bsz, seq_len, encoding_dim)


def positional_encoding_forward(x, encoding_dim, padding_idx, out_dtype=jnp.float32):
    """Pallas equivalent of PositionalEncoding(encoding_dim, padding_idx)(x).

    padding_idx=None reproduces the module's weights[1:seq_len+1] branch
    (shape (seq_len, encoding_dim)); otherwise the gather branch
    (shape (bsz, seq_len, encoding_dim)). Math is f32; out_dtype (e.g. bf16)
    only affects the final store (recommended on v5e/v6e, which are
    store-bandwidth bound for this kernel).
    """
    if padding_idx is None:
        seq_len = x.shape[1]
        positions = jnp.arange(1, seq_len + 1, dtype=jnp.int32)[None, :]
        return _encode_positions(positions, encoding_dim, out_dtype)[0]
    pad = int(padding_idx)
    mask = (x != pad).astype(jnp.int32)
    positions = jnp.cumsum(mask, axis=1) * mask + pad   # fairseq make_positions
    return _encode_positions(positions, encoding_dim, out_dtype)


# ---------------- pure-JAX reference (mirrors the PyTorch module) ----------------
def _get_embedding_ref(num_encodings, encoding_dim):
    half_dim = encoding_dim // 2
    emb = math.log(10000.0) / max(half_dim - 1, 1)
    emb = jnp.exp(jnp.arange(half_dim, dtype=jnp.float32) * -emb)
    emb = jnp.arange(num_encodings, dtype=jnp.float32)[:, None] * emb[None, :]
    emb = jnp.concatenate([jnp.sin(emb), jnp.cos(emb)], axis=1)
    if encoding_dim % 2 == 1:
        emb = jnp.concatenate([emb, jnp.zeros((num_encodings, 1), jnp.float32)], axis=1)
    emb = emb.at[0, :].set(0.0)
    return emb


def _forward_ref(x, encoding_dim, padding_idx):
    bsz, seq_len = x.shape
    if padding_idx is None:
        return _get_embedding_ref(seq_len + 1, encoding_dim)[1:seq_len + 1]
    weights = _get_embedding_ref(seq_len + 1 + padding_idx, encoding_dim)
    mask = (x != padding_idx).astype(jnp.int32)
    positions = jnp.cumsum(mask, axis=1) * mask + padding_idx   # fairseq make_positions
    return weights[positions.reshape(-1)].reshape(bsz, seq_len, -1)


if __name__ == "__main__":
    key = jax.random.PRNGKey(0)

    # 1) Small padded-gather branch (padding_idx=0, some pads).
    bsz, seq_len, encoding_dim, padding_idx = 2, 8, 32, 0
    x = jax.random.randint(key, (bsz, seq_len), minval=1, maxval=50, dtype=jnp.int32)
    x = x.at[0, -2:].set(padding_idx)
    x = x.at[1, -1:].set(padding_idx)
    out = jax.block_until_ready(positional_encoding_forward(x, encoding_dim, padding_idx))
    ref = _forward_ref(x, encoding_dim, padding_idx)
    assert out.shape == (bsz, seq_len, encoding_dim), out.shape
    assert jnp.allclose(out, ref, atol=1e-3, rtol=1e-3), "mismatch vs reference"

    # 2) padding_idx=None branch: weights[1:seq_len+1], shape (seq_len, dim).
    out_none = jax.block_until_ready(positional_encoding_forward(x, encoding_dim, None))
    ref_none = _forward_ref(x, encoding_dim, None)
    assert out_none.shape == (seq_len, encoding_dim), out_none.shape
    assert jnp.allclose(out_none, ref_none, atol=1e-3, rtol=1e-3), "mismatch (None branch)"

    # 3) Odd encoding_dim (trailing zero column path).
    out_odd = jax.block_until_ready(positional_encoding_forward(x, 33, padding_idx))
    ref_odd = _forward_ref(x, 33, padding_idx)
    assert out_odd.shape == (bsz, seq_len, 33), out_odd.shape
    assert jnp.allclose(out_odd, ref_odd, atol=1e-3, rtol=1e-3), "mismatch (odd dim)"

    # 4) Multi-tile, non-power-of-two seq_len (row padding path), padding_idx != 0.
    k1, k2 = jax.random.split(key)
    bsz2, seq2, dim2, pad2 = 2, 1000, 256, 2
    x2 = jax.random.randint(k1, (bsz2, seq2), minval=3, maxval=100, dtype=jnp.int32)
    x2 = jnp.where(jax.random.uniform(k2, (bsz2, seq2)) < 0.2, pad2, x2)
    out2 = jax.block_until_ready(positional_encoding_forward(x2, dim2, pad2))
    ref2 = _forward_ref(x2, dim2, pad2)
    assert out2.shape == (bsz2, seq2, dim2), out2.shape
    assert jnp.allclose(out2, ref2, atol=1e-3, rtol=1e-3), "mismatch (multi-tile)"

    print("KERNEL_OK")
</pallas_src>

<mosaic_0001>
module attributes {stable_mosaic.version = 11 : i64} {
  func.func @_pos_enc_kernel(%arg0: i32, %arg1: memref<16x1xf32, #tpu.memory_space<vmem>>, %arg2: memref<1x16xf32, #tpu.memory_space<vmem>>, %arg3: memref<16x32xf32, #tpu.memory_space<vmem>>) attributes {dimension_semantics = [#tpu.dimension_semantics<parallel>], iteration_bounds = array<i64: 1>, scalar_prefetch = 0 : i64, scratch_operands = 0 : i64, tpu.core_type = #tpu.core_type<tc>, window_params = [{transform_indices = @transform_0, window_bounds = array<i64: 16, 1>}, {pipeline_mode = #tpu.pipeline_mode<synchronous>, transform_indices = @transform_1, window_bounds = array<i64: 1, 16>}, {transform_indices = @transform_2, window_bounds = array<i64: 16, 32>}]} {
    %c0 = arith.constant 0 : index
    %c0_0 = arith.constant 0 : index
    %0 = vector.load %arg1[%c0, %c0_0] : memref<16x1xf32, #tpu.memory_space<vmem>>, vector<16x1xf32>
    %c0_1 = arith.constant 0 : index
    %c0_2 = arith.constant 0 : index
    %1 = vector.load %arg2[%c0_1, %c0_2] : memref<1x16xf32, #tpu.memory_space<vmem>>, vector<1x16xf32>
    %2 = vector.broadcast %0 : vector<16x1xf32> to vector<16x16xf32>
    %3 = vector.broadcast %1 : vector<1x16xf32> to vector<16x16xf32>
    %4 = arith.mulf %2, %3 : vector<16x16xf32>
    %5 = math.sin %4 : vector<16x16xf32>
    %c0_3 = arith.constant 0 : index
    %c0_4 = arith.constant 0 : index
    %6 = vector.load %arg3[%c0_3, %c0_4] : memref<16x32xf32, #tpu.memory_space<vmem>>, vector<16x16xf32>
    tpu.vector_store %arg3[%c0_3, %c0_4], %5 {strides = array<i32>} : memref<16x32xf32, #tpu.memory_space<vmem>>, vector<16x16xf32>,
    %cst = arith.constant 0.000000e+00 : f32
    %7 = vector.broadcast %cst : f32 to vector<16x1xf32>
    %8 = arith.cmpf one, %0, %7 : vector<16x1xf32>
    %9 = math.cos %4 : vector<16x16xf32>
    %cst_5 = arith.constant 0.000000e+00 : f32
    %10 = vector.shape_cast %8 : vector<16x1xi1> to vector<16x1xi1>
    %11 = vector.broadcast %10 : vector<16x1xi1> to vector<16x16xi1>
    %12 = vector.broadcast %cst_5 : f32 to vector<16x16xf32>
    %13 = arith.select %11, %9, %12 : vector<16x16xi1>, vector<16x16xf32>
    %c0_6 = arith.constant 0 : index
    %c16 = arith.constant 16 : index
    %14 = vector.load %arg3[%c0_6, %c16] : memref<16x32xf32, #tpu.memory_space<vmem>>, vector<16x16xf32>
    tpu.vector_store %arg3[%c0_6, %c16], %13 {strides = array<i32>} : memref<16x32xf32, #tpu.memory_space<vmem>>, vector<16x16xf32>,
    return
  }
  func.func @transform_0(%arg0: i32) -> (i32, i32) {
    %c0_i32 = arith.constant 0 : i32
    %c0_i32_0 = arith.constant 0 : i32
    return %arg0, %c0_i32 : i32, i32
  }
  func.func @transform_1(%arg0: i32) -> (i32, i32) {
    %c0_i32 = arith.constant 0 : i32
    %c0_i32_0 = arith.constant 0 : i32
    %c0_i32_1 = arith.constant 0 : i32
    return %c0_i32, %c0_i32_0 : i32, i32
  }
  func.func @transform_2(%arg0: i32) -> (i32, i32) {
    %c0_i32 = arith.constant 0 : i32
    %c0_i32_0 = arith.constant 0 : i32
    return %arg0, %c0_i32 : i32, i32
  }
}

</mosaic_0001>

<llo_original>
// kernel: tpu_custom_call.1
$region0: #{tpu_custom_call.1}
  #allocation0 [shape = 'u32[]', space=smem, size = 0x4, offset = 0x4, fixed_abs, tag = 'smem constant byte address 0x4 - core index']
  #allocation1 [shape = 'u32[72,128]{1,0:T(1,128)}', space=vmem, size = 0x9000, scoped, tag = 'internal scratch']
  %s0 = inlined_call_operand.vmem [shape: f32[16,1], index: 0, kind: input, shape index: {}]
  %s1 = inlined_call_operand.vmem [shape: f32[1,16], index: 1, kind: input, shape index: {}]
  %s2 = inlined_call_operand.hbm [shape: f32[16,32], index: 2, kind: output, shape index: {}]
  %s3 = sld [smem:[#allocation0]]
  $region18: #{tpu_custom_call.1} parent=0
    _
  %s5 = ssub.s32 1, %s3
  %s6 = scalar_select 0, %s5, %s3
  $region1: #{tpu_custom_call.1} parent=0
    #allocation2 [shape = 'u8[8192]{0}', space=vmem, size = 0x2000, scoped, tag = 'output window, operand 0, single buffered']
    #allocation3 [shape = 's32[1]{0}', space=sflag, size = 0x4, scoped, tag = 'scoped memory for tpu_custom_call.1']
    %7 = vsyncpa [#allocation3], 0
    // Predicated region
    $region2: #{tpu_custom_call.1} parent=1 // pred_check
      _
    $region3: #{tpu_custom_call.1} parent=1 // pred_check_branch
      %9 = sbr.rel (0) target = $region5
    $region4: #{tpu_custom_call.1} parent=1 // pred_region
      _
    $region5: #{tpu_custom_call.1} parent=1 // pred_fallthru
      _
    // Predicated region
    $region6: #{tpu_custom_call.1} parent=1 // pred_check
      _
    $region7: #{tpu_custom_call.1} parent=1 // pred_check_branch
      %11 = sbr.rel (0) target = $region9
    $region8: #{tpu_custom_call.1} parent=1 // pred_region
      _
    $region9: #{tpu_custom_call.1} parent=1 // pred_fallthru
      _
    %v12 = vld [vmem:[%s0] sm:$0xff]
    %v13 = vld [vmem:[%s0 + $0x8] sm:$0xff]
    %v14 = vld [vmem:[%s1] sm:$0x1]
    %16 = vset.pattern.permute.xlu0 0
    %17 = vperm.xlu0 %16, %v12
    %v18 = vpop.permute.xlu0 %17
    %21 = vset.pattern.permute.xlu0 0
    %22 = vperm.xlu0 %21, %v13
    %v23 = vpop.permute.xlu0 %22
    %v26 = vperm.slane %v14, 0
    %v28 = vmul.f32 %v18, %v26
    %v29 = vmul.f32 %v23, %v26
    %v30 = vand.u32 2147483647, %v28
    %vm31 = vcmp.le.f32.partialorder %v30, 0.7853982
    %vm32 = vcmp.lt.s32.totalorder %v28, 0
    %v33 = vand.u32 %v28, 2139095040
    %v34 = vshrl.u32 %v33, 23
    %v35 = vsub.s32 %v34, 127
    %v36 = vand.u32 2147483647, %v28
    %v37 = vand.u32 %v36, 8388607
    %v38 = vor.u32 %v37, 8388608
    %v39 = vsub.s32 0, %v38
    %v40 = vadd.s32 %v35, 1
    %vm41 = vcmp.gt.s32.totalorder %v40, 0
    %v42 = vsel %vm41, %v40, 0
    %v43 = vshrl.u32 %v42, 5
    %v44 = vand.u32 %v42, 31
    %v45 = vsub.s32 32, %v44
    %v46 = vshrl.u32 683565275, %v45
    %v47 = vshll.u32 683565275, %v44
    %v48 = vshrl.u32 2475754826, %v45
    %v49 = vor.u32 %v47, %v48
    %v50 = vshll.u32 2475754826, %v44
    %v51 = vshrl.u32 2131351028, %v45
    %v52 = vor.u32 %v50, %v51
    %v53 = vshll.u32 2131351028, %v44
    %v54 = vshrl.u32 2102212464, %v45
    %v55 = vor.u32 %v53, %v54
    %v56 = vshll.u32 2102212464, %v44
    %v57 = vshrl.u32 920167782, %v45
    %v58 = vor.u32 %v56, %v57
    %v59 = vshll.u32 920167782, %v44
    %v60 = vshrl.u32 1326507024, %v45
    %v61 = vor.u32 %v59, %v60
    %vm62 = vcmp.lt.s32.totalorder %v43, 1
    %vm63 = vcmp.lt.s32.totalorder %v43, 2
    %vm64 = vcmp.lt.s32.totalorder %v43, 3
    %vm65 = vcmp.lt.s32.totalorder %v43, 4
    %v66 = vsel %vm62, %v46, %v49
    %v67 = vsel %vm65, %v55, 2102212464
    %v68 = vsel %vm64, %v52, %v67
    %v69 = vsel %vm63, %v66, %v68
    %v70 = vsel %vm62, %v49, %v52
    %v71 = vsel %vm65, %v58, 920167782
    %v72 = vsel %vm64, %v55, %v71
    %v73 = vsel %vm63, %v70, %v72
    %v74 = vsel %vm62, %v52, %v55
    %v75 = vsel %vm65, %v61, 1326507024
    %v76 = vsel %vm64, %v58, %v75
    %v77 = vsel %vm63, %v74, %v76
    %v78 = vshll.u32 %v38, 8
    %v79 = vand.u32 %v78, 65535
    %v80 = vshrl.u32 %v78, 16
    %v81 = vand.u32 %v77, 65535
    %v82 = vshrl.u32 %v77, 16
    %v83 = vmul.u32 %v79, %v81
    %v84 = vmul.u32 %v79, %v82
    %v85 = vmul.u32 %v80, %v81
    %v86 = vmul.u32 %v80, %v82
    %v87 = vshll.u32 %v84, 16
    %v88 = vshrl.u32 %v84, 16
    %v89 = vshll.u32 %v85, 16
    %v90 = vshrl.u32 %v85, 16
    %vm91 = vc.u32 %v83, %v87
    %v92 = vsel %vm91, 1, 0
    %v93 = vadd.s32 %v83, %v87
    %v94 = vadd.s32 %v86, %v92
    %vm95 = vc.u32 %v93, %v89
    %v96 = vsel %vm95, 1, 0
    %v97 = vadd.s32 %v93, %v89
    %v98 = vadd.s32 %v94, %v96
    %v99 = vadd.s32 %v98, %v88
    %v100 = vadd.s32 %v99, %v90
    %v101 = vand.u32 %v78, 65535
    %v102 = vshrl.u32 %v78, 16
    %v103 = vand.u32 %v73, 65535
    %v104 = vshrl.u32 %v73, 16
    %v105 = vmul.u32 %v101, %v103
    %v106 = vmul.u32 %v101, %v104
    %v107 = vmul.u32 %v102, %v103
    %v108 = vmul.u32 %v102, %v104
    %v109 = vshll.u32 %v106, 16
    %v110 = vshrl.u32 %v106, 16
    %v111 = vshll.u32 %v107, 16
    %v112 = vshrl.u32 %v107, 16
    %vm113 = vc.u32 %v105, %v109
    %v114 = vsel %vm113, 1, 0
    %v115 = vadd.s32 %v105, %v109
    %v116 = vadd.s32 %v108, %v114
    %vm117 = vc.u32 %v115, %v111
    %v118 = vsel %vm117, 1, 0
    %v119 = vadd.s32 %v115, %v111
    %v120 = vadd.s32 %v116, %v118
    %v121 = vadd.s32 %v120, %v110
    %v122 = vadd.s32 %v121, %v112
    %v123 = vmul.u32 %v78, %v69
    %v124 = vadd.s32 %v100, %v119
    %vm125 = vc.u32 %v100, %v119
    %v126 = vadd.s32 %v122, 1
    %v127 = vsel %vm125, %v126, %v122
    %v128 = vadd.s32 %v123, %v127
    %v129 = vadd.s32 %v128, 536870912
    %v130 = vshrl.u32 %v129, 30
    %v131 = vshll.u32 %v130, 30
    %v132 = vsub.s32 %v128, %v131
    %vm133 = vcmp.lt.s32.totalorder %v132, 0
    %v134 = vsub.s32 0, %v132
    %v135 = vsel %vm133, %v134, %v132
    %v136 = vclz %v135
    %v137 = vsub.s32 %v136, 2
    %vm138 = vcmp.gt.s32.totalorder 0, %v137
    %v139 = vsel %vm138, 0, %v137
    %v140 = vsub.s32 32, %v139
    %v141 = vshll.u32 %v132, %v139
    %v142 = vshrl.u32 %v124, %v140
    %v143 = vor.u32 %v141, %v142
    %v144 = vsub.s32 4294967266, %v139
    %v145 = vadd.s32 %v144, 127
    %v146 = vshll.u32 %v145, 23
    %v147 = vor.u32 4788187, %v146
    %v148 = vand.u32 2147483647, %v147
    %v150 = vcvt.s32.f32 %v143
    %v151 = vmul.f32 %v150, %v148
    %v152 = vxor.u32 %v151, 2147483648
    %v153 = vsel %vm32, %v152, %v151
    %v154 = vsub.s32 4, %v130
    %v155 = vsel %vm32, %v154, %v130
    %v156 = vsel %vm31, %v28, %v153
    %v157 = vsel %vm31, 0, %v155
    %v158 = vmul.f32 %v156, %v156
    %v159 = vmul.f32 %v158, -0.001358992
    %v160 = vadd.f32 %v159, 0.041655596
    %v161 = vmul.f32 %v158, %v160
    %v162 = vadd.f32 %v161, -0.4999988
    %v163 = vmul.f32 %v158, %v162
    %v164 = vadd.f32 1.0, %v163
    %v165 = vmul.f32 %v156, %v156
    %v166 = vmul.f32 %v165, -0.00019511016
    %v167 = vadd.f32 %v166, 0.008332121
    %v168 = vmul.f32 %v165, %v167
    %v169 = vadd.f32 %v168, -0.16666654
    %v170 = vmul.f32 %v165, %v169
    %v171 = vadd.f32 %v170, 1.0
    %v172 = vmul.f32 %v171, %v156
    %vm173 = vweird.f32 %v28
    %v174 = vadd.s32 %v157, 3
    %v175 = vand.u32 %v174, 3
    %vm176 = vcmp.lt.s32.totalorder %v175, 2
    %vm177 = vcmp.eq.s32.totalorder %v175, 0
    %v178 = vxor.u32 %v172, 2147483648
    %v179 = vsel %vm177, %v164, %v178
    %vm180 = vcmp.eq.s32.totalorder %v175, 2
    %v181 = vxor.u32 %v164, 2147483648
    %v182 = vsel %vm180, %v181, %v172
    %v183 = vsel %vm176, %v179, %v182
    %v184 = vsel %vm173, nan, %v183
    %v185 = vand.u32 2147483647, %v29
    %vm186 = vcmp.le.f32.partialorder %v185, 0.7853982
    %vm187 = vcmp.lt.s32.totalorder %v29, 0
    %v188 = vand.u32 %v29, 2139095040
    %v189 = vshrl.u32 %v188, 23
    %v190 = vsub.s32 %v189, 127
    %v191 = vand.u32 2147483647, %v29
    %v192 = vand.u32 %v191, 8388607
    %v193 = vor.u32 %v192, 8388608
    %v194 = vsub.s32 0, %v193
    %v195 = vadd.s32 %v190, 1
    %vm196 = vcmp.gt.s32.totalorder %v195, 0
    %v197 = vsel %vm196, %v195, 0
    %v198 = vshrl.u32 %v197, 5
    %v199 = vand.u32 %v197, 31
    %v200 = vsub.s32 32, %v199
    %v201 = vshrl.u32 683565275, %v200
    %v202 = vshll.u32 683565275, %v199
    %v203 = vshrl.u32 2475754826, %v200
    %v204 = vor.u32 %v202, %v203
    %v205 = vshll.u32 2475754826, %v199
    %v206 = vshrl.u32 2131351028, %v200
    %v207 = vor.u32 %v205, %v206
    %v208 = vshll.u32 2131351028, %v199
    %v209 = vshrl.u32 2102212464, %v200
    %v210 = vor.u32 %v208, %v209
    %v211 = vshll.u32 2102212464, %v199
    %v212 = vshrl.u32 920167782, %v200
    %v213 = vor.u32 %v211, %v212
    %v214 = vshll.u32 920167782, %v199
    %v215 = vshrl.u32 1326507024, %v200
    %v216 = vor.u32 %v214, %v215
    %vm217 = vcmp.lt.s32.totalorder %v198, 1
    %vm218 = vcmp.lt.s32.totalorder %v198, 2
    %vm219 = vcmp.lt.s32.totalorder %v198, 3
    %vm220 = vcmp.lt.s32.totalorder %v198, 4
    %v221 = vsel %vm217, %v201, %v204
    %v222 = vsel %vm220, %v210, 2102212464
    %v223 = vsel %vm219, %v207, %v222
    %v224 = vsel %vm218, %v221, %v223
    %v225 = vsel %vm217, %v204, %v207
    %v226 = vsel %vm220, %v213, 920167782
    %v227 = vsel %vm219, %v210, %v226
    %v228 = vsel %vm218, %v225, %v227
    %v229 = vsel %vm217, %v207, %v210
    %v230 = vsel %vm220, %v216, 1326507024
    %v231 = vsel %vm219, %v213, %v230
    %v232 = vsel %vm218, %v229, %v231
    %v233 = vshll.u32 %v193, 8
    %v234 = vand.u32 %v233, 65535
    %v235 = vshrl.u32 %v233, 16
    %v236 = vand.u32 %v232, 65535
    %v237 = vshrl.u32 %v232, 16
    %v238 = vmul.u32 %v234, %v236
    %v239 = vmul.u32 %v234, %v237
    %v240 = vmul.u32 %v235, %v236
    %v241 = vmul.u32 %v235, %v237
    %v242 = vshll.u32 %v239, 16
    %v243 = vshrl.u32 %v239, 16
    %v244 = vshll.u32 %v240, 16
    %v245 = vshrl.u32 %v240, 16
    %vm246 = vc.u32 %v238, %v242
    %v247 = vsel %vm246, 1, 0
    %v248 = vadd.s32 %v238, %v242
    %v249 = vadd.s32 %v241, %v247
    %vm250 = vc.u32 %v248, %v244
    %v251 = vsel %vm250, 1, 0
    %v252 = vadd.s32 %v248, %v244
    %v253 = vadd.s32 %v249, %v251
    %v254 = vadd.s32 %v253, %v243
    %v255 = vadd.s32 %v254, %v245
    %v256 = vand.u32 %v233, 65535
    %v257 = vshrl.u32 %v233, 16
    %v258 = vand.u32 %v228, 65535
    %v259 = vshrl.u32 %v228, 16
    %v260 = vmul.u32 %v256, %v258
    %v261 = vmul.u32 %v256, %v259
    %v262 = vmul.u32 %v257, %v258
    %v263 = vmul.u32 %v257, %v259
    %v264 = vshll.u32 %v261, 16
    %v265 = vshrl.u32 %v261, 16
    %v266 = vshll.u32 %v262, 16
    %v267 = vshrl.u32 %v262, 16
    %vm268 = vc.u32 %v260, %v264
    %v269 = vsel %vm268, 1, 0
    %v270 = vadd.s32 %v260, %v264
    %v271 = vadd.s32 %v263, %v269
    %vm272 = vc.u32 %v270, %v266
    %v273 = vsel %vm272, 1, 0
    %v274 = vadd.s32 %v270, %v266
    %v275 = vadd.s32 %v271, %v273
    %v276 = vadd.s32 %v275, %v265
    %v277 = vadd.s32 %v276, %v267
    %v278 = vmul.u32 %v233, %v224
    %v279 = vadd.s32 %v255, %v274
    %vm280 = vc.u32 %v255, %v274
    %v281 = vadd.s32 %v277, 1
    %v282 = vsel %vm280, %v281, %v277
    %v283 = vadd.s32 %v278, %v282
    %v284 = vadd.s32 %v283, 536870912
    %v285 = vshrl.u32 %v284, 30
    %v286 = vshll.u32 %v285, 30
    %v287 = vsub.s32 %v283, %v286
    %vm288 = vcmp.lt.s32.totalorder %v287, 0
    %v289 = vsub.s32 0, %v287
    %v290 = vsel %vm288, %v289, %v287
    %v291 = vclz %v290
    %v292 = vsub.s32 %v291, 2
    %vm293 = vcmp.gt.s32.totalorder 0, %v292
    %v294 = vsel %vm293, 0, %v292
    %v295 = vsub.s32 32, %v294
    %v296 = vshll.u32 %v287, %v294
    %v297 = vshrl.u32 %v279, %v295
    %v298 = vor.u32 %v296, %v297
    %v299 = vsub.s32 4294967266, %v294
    %v300 = vadd.s32 %v299, 127
    %v301 = vshll.u32 %v300, 23
    %v302 = vor.u32 4788187, %v301
    %v303 = vand.u32 2147483647, %v302
    %v305 = vcvt.s32.f32 %v298
    %v306 = vmul.f32 %v305, %v303
    %v307 = vxor.u32 %v306, 2147483648
    %v308 = vsel %vm187, %v307, %v306
    %v309 = vsub.s32 4, %v285
    %v310 = vsel %vm187, %v309, %v285
    %v311 = vsel %vm186, %v29, %v308
    %v312 = vsel %vm186, 0, %v310
    %v313 = vmul.f32 %v311, %v311
    %v314 = vmul.f32 %v313, -0.001358992
    %v315 = vadd.f32 %v314, 0.041655596
    %v316 = vmul.f32 %v313, %v315
    %v317 = vadd.f32 %v316, -0.4999988
    %v318 = vmul.f32 %v313, %v317
    %v319 = vadd.f32 1.0, %v318
    %v320 = vmul.f32 %v311, %v311
    %v321 = vmul.f32 %v320, -0.00019511016
    %v322 = vadd.f32 %v321, 0.008332121
    %v323 = vmul.f32 %v320, %v322
    %v324 = vadd.f32 %v323, -0.16666654
    %v325 = vmul.f32 %v320, %v324
    %v326 = vadd.f32 %v325, 1.0
    %v327 = vmul.f32 %v326, %v311
    %vm328 = vweird.f32 %v29
    %v329 = vadd.s32 %v312, 3
    %v330 = vand.u32 %v329, 3
    %vm331 = vcmp.lt.s32.totalorder %v330, 2
    %vm332 = vcmp.eq.s32.totalorder %v330, 0
    %v333 = vxor.u32 %v327, 2147483648
    %v334 = vsel %vm332, %v319, %v333
    %vm335 = vcmp.eq.s32.totalorder %v330, 2
    %v336 = vxor.u32 %v319, 2147483648
    %v337 = vsel %vm335, %v336, %v327
    %v338 = vsel %vm331, %v334, %v337
    %v339 = vsel %vm328, nan, %v338
    %vm340 = vcmask 130048
    %341 = vst.msk [vmem:[#allocation2] sm:$0xff] %vm340, %v184
    %342 = vst.msk [vmem:[#allocation2 + $0x8] sm:$0xff] %vm340, %v339
    %vm343 = vcmp.ne.f32.partialorder %v12, 0.0
    %vm344 = vcmp.ne.f32.partialorder %v13, 0.0
    %v345 = vand.u32 2147483647, %v28
    %vm346 = vcmp.le.f32.partialorder %v345, 0.7853982
    %vm347 = vcmp.lt.s32.totalorder %v28, 0
    %v348 = vand.u32 %v28, 2139095040
    %v349 = vshrl.u32 %v348, 23
    %v350 = vsub.s32 %v349, 127
    %v351 = vand.u32 2147483647, %v28
    %v352 = vand.u32 %v351, 8388607
    %v353 = vor.u32 %v352, 8388608
    %v354 = vsub.s32 0, %v353
    %v355 = vadd.s32 %v350, 1
    %vm356 = vcmp.gt.s32.totalorder %v355, 0
    %v357 = vsel %vm356, %v355, 0
    %v358 = vshrl.u32 %v357, 5
    %v359 = vand.u32 %v357, 31
    %v360 = vsub.s32 32, %v359
    %v361 = vshrl.u32 683565275, %v360
    %v362 = vshll.u32 683565275, %v359
    %v363 = vshrl.u32 2475754826, %v360
    %v364 = vor.u32 %v362, %v363
    %v365 = vshll.u32 2475754826, %v359
    %v366 = vshrl.u32 2131351028, %v360
    %v367 = vor.u32 %v365, %v366
    %v368 = vshll.u32 2131351028, %v359
    %v369 = vshrl.u32 2102212464, %v360
    %v370 = vor.u32 %v368, %v369
    %v371 = vshll.u32 2102212464, %v359
    %v372 = vshrl.u32 920167782, %v360
    %v373 = vor.u32 %v371, %v372
    %v374 = vshll.u32 920167782, %v359
    %v375 = vshrl.u32 1326507024, %v360
    %v376 = vor.u32 %v374, %v375
    %vm377 = vcmp.lt.s32.totalorder %v358, 1
    %vm378 = vcmp.lt.s32.totalorder %v358, 2
    %vm379 = vcmp.lt.s32.totalorder %v358, 3
    %vm380 = vcmp.lt.s32.totalorder %v358, 4
    %v381 = vsel %vm377, %v361, %v364
    %v382 = vsel %vm380, %v370, 2102212464
    %v383 = vsel %vm379, %v367, %v382
    %v384 = vsel %vm378, %v381, %v383
    %v385 = vsel %vm377, %v364, %v367
    %v386 = vsel %vm380, %v373, 920167782
    %v387 = vsel %vm379, %v370, %v386
    %v388 = vsel %vm378, %v385, %v387
    %v389 = vsel %vm377, %v367, %v370
    %v390 = vsel %vm380, %v376, 1326507024
    %v391 = vsel %vm379, %v373, %v390
    %v392 = vsel %vm378, %v389, %v391
    %v393 = vshll.u32 %v353, 8
    %v394 = vand.u32 %v393, 65535
    %v395 = vshrl.u32 %v393, 16
    %v396 = vand.u32 %v392, 65535
    %v397 = vshrl.u32 %v392, 16
    %v398 = vmul.u32 %v394, %v396
    %v399 = vmul.u32 %v394, %v397
    %v400 = vmul.u32 %v395, %v396
    %v401 = vmul.u32 %v395, %v397
    %v402 = vshll.u32 %v399, 16
    %v403 = vshrl.u32 %v399, 16
    %v404 = vshll.u32 %v400, 16
    %v405 = vshrl.u32 %v400, 16
    %vm406 = vc.u32 %v398, %v402
    %v407 = vsel %vm406, 1, 0
    %v408 = vadd.s32 %v398, %v402
    %v409 = vadd.s32 %v401, %v407
    %vm410 = vc.u32 %v408, %v404
    %v411 = vsel %vm410, 1, 0
    %v412 = vadd.s32 %v408, %v404
    %v413 = vadd.s32 %v409, %v411
    %v414 = vadd.s32 %v413, %v403
    %v415 = vadd.s32 %v414, %v405
    %v416 = vand.u32 %v393, 65535
    %v417 = vshrl.u32 %v393, 16
    %v418 = vand.u32 %v388, 65535
    %v419 = vshrl.u32 %v388, 16
    %v420 = vmul.u32 %v416, %v418
    %v421 = vmul.u32 %v416, %v419
    %v422 = vmul.u32 %v417, %v418
    %v423 = vmul.u32 %v417, %v419
    %v424 = vshll.u32 %v421, 16
    %v425 = vshrl.u32 %v421, 16
    %v426 = vshll.u32 %v422, 16
    %v427 = vshrl.u32 %v422, 16
    %vm428 = vc.u32 %v420, %v424
    %v429 = vsel %vm428, 1, 0
    %v430 = vadd.s32 %v420, %v424
    %v431 = vadd.s32 %v423, %v429
    %vm432 = vc.u32 %v430, %v426
    %v433 = vsel %vm432, 1, 0
    %v434 = vadd.s32 %v430, %v426
    %v435 = vadd.s32 %v431, %v433
    %v436 = vadd.s32 %v435, %v425
    %v437 = vadd.s32 %v436, %v427
    %v438 = vmul.u32 %v393, %v384
    %v439 = vadd.s32 %v415, %v434
    %vm440 = vc.u32 %v415, %v434
    %v441 = vadd.s32 %v437, 1
    %v442 = vsel %vm440, %v441, %v437
    %v443 = vadd.s32 %v438, %v442
    %v444 = vadd.s32 %v443, 536870912
    %v445 = vshrl.u32 %v444, 30
    %v446 = vshll.u32 %v445, 30
    %v447 = vsub.s32 %v443, %v446
    %vm448 = vcmp.lt.s32.totalorder %v447, 0
    %v449 = vsub.s32 0, %v447
    %v450 = vsel %vm448, %v449, %v447
    %v451 = vclz %v450
    %v452 = vsub.s32 %v451, 2
    %vm453 = vcmp.gt.s32.totalorder 0, %v452
    %v454 = vsel %vm453, 0, %v452
    %v455 = vsub.s32 32, %v454
    %v456 = vshll.u32 %v447, %v454
    %v457 = vshrl.u32 %v439, %v455
    %v458 = vor.u32 %v456, %v457
    %v459 = vsub.s32 4294967266, %v454
    %v460 = vadd.s32 %v459, 127
    %v461 = vshll.u32 %v460, 23
    %v462 = vor.u32 4788187, %v461
    %v463 = vand.u32 2147483647, %v462
    %v465 = vcvt.s32.f32 %v458
    %v466 = vmul.f32 %v465, %v463
    %v467 = vxor.u32 %v466, 2147483648
    %v468 = vsel %vm347, %v467, %v466
    %v469 = vsub.s32 4, %v445
    %v470 = vsel %vm347, %v469, %v445
    %v471 = vsel %vm346, %v28, %v468
    %v472 = vsel %vm346, 0, %v470
    %v473 = vmul.f32 %v471, %v471
    %v474 = vmul.f32 %v473, -0.001358992
    %v475 = vadd.f32 %v474, 0.041655596
    %v476 = vmul.f32 %v473, %v475
    %v477 = vadd.f32 %v476, -0.4999988
    %v478 = vmul.f32 %v473, %v477
    %v479 = vadd.f32 1.0, %v478
    %v480 = vmul.f32 %v471, %v471
    %v481 = vmul.f32 %v480, -0.00019511016
    %v482 = vadd.f32 %v481, 0.008332121
    %v483 = vmul.f32 %v480, %v482
    %v484 = vadd.f32 %v483, -0.16666654
    %v485 = vmul.f32 %v480, %v484
    %v486 = vadd.f32 %v485, 1.0
    %v487 = vmul.f32 %v486, %v471
    %vm488 = vweird.f32 %v28
    %v489 = vand.u32 %v472, 3
    %vm490 = vcmp.lt.s32.totalorder %v489, 2
    %vm491 = vcmp.eq.s32.totalorder %v489, 0
    %v492 = vxor.u32 %v487, 2147483648
    %v493 = vsel %vm491, %v479, %v492
    %vm494 = vcmp.eq.s32.totalorder %v489, 2
    %v495 = vxor.u32 %v479, 2147483648
    %v496 = vsel %vm494, %v495, %v487
    %v497 = vsel %vm490, %v493, %v496
    %v498 = vsel %vm488, nan, %v497
    %v499 = vand.u32 2147483647, %v29
    %vm500 = vcmp.le.f32.partialorder %v499, 0.7853982
    %vm501 = vcmp.lt.s32.totalorder %v29, 0
    %v502 = vand.u32 %v29, 2139095040
    %v503 = vshrl.u32 %v502, 23
    %v504 = vsub.s32 %v503, 127
    %v505 = vand.u32 2147483647, %v29
    %v506 = vand.u32 %v505, 8388607
    %v507 = vor.u32 %v506, 8388608
    %v508 = vsub.s32 0, %v507
    %v509 = vadd.s32 %v504, 1
    %vm510 = vcmp.gt.s32.totalorder %v509, 0
    %v511 = vsel %vm510, %v509, 0
    %v512 = vshrl.u32 %v511, 5
    %v513 = vand.u32 %v511, 31
    %v514 = vsub.s32 32, %v513
    %v515 = vshrl.u32 683565275, %v514
    %v516 = vshll.u32 683565275, %v513
    %v517 = vshrl.u32 2475754826, %v514
    %v518 = vor.u32 %v516, %v517
    %v519 = vshll.u32 2475754826, %v513
    %v520 = vshrl.u32 2131351028, %v514
    %v521 = vor.u32 %v519, %v520
    %v522 = vshll.u32 2131351028, %v513
    %v523 = vshrl.u32 2102212464, %v514
    %v524 = vor.u32 %v522, %v523
    %v525 = vshll.u32 2102212464, %v513
    %v526 = vshrl.u32 920167782, %v514
    %v527 = vor.u32 %v525, %v526
    %v528 = vshll.u32 920167782, %v513
    %v529 = vshrl.u32 1326507024, %v514
    %v530 = vor.u32 %v528, %v529
    %vm531 = vcmp.lt.s32.totalorder %v512, 1
    %vm532 = vcmp.lt.s32.totalorder %v512, 2
    %vm533 = vcmp.lt.s32.totalorder %v512, 3
    %vm534 = vcmp.lt.s32.totalorder %v512, 4
    %v535 = vsel %vm531, %v515, %v518
    %v536 = vsel %vm534, %v524, 2102212464
    %v537 = vsel %vm533, %v521, %v536
    %v538 = vsel %vm532, %v535, %v537
    %v539 = vsel %vm531, %v518, %v521
    %v540 = vsel %vm534, %v527, 920167782
    %v541 = vsel %vm533, %v524, %v540
    %v542 = vsel %vm532, %v539, %v541
    %v543 = vsel %vm531, %v521, %v524
    %v544 = vsel %vm534, %v530, 1326507024
    %v545 = vsel %vm533, %v527, %v544
    %v546 = vsel %vm532, %v543, %v545
    %v547 = vshll.u32 %v507, 8
    %v548 = vand.u32 %v547, 65535
    %v549 = vshrl.u32 %v547, 16
    %v550 = vand.u32 %v546, 65535
    %v551 = vshrl.u32 %v546, 16
    %v552 = vmul.u32 %v548, %v550
    %v553 = vmul.u32 %v548, %v551
    %v554 = vmul.u32 %v549, %v550
    %v555 = vmul.u32 %v549, %v551
    %v556 = vshll.u32 %v553, 16
    %v557 = vshrl.u32 %v553, 16
    %v558 = vshll.u32 %v554, 16
    %v559 = vshrl.u32 %v554, 16
    %vm560 = vc.u32 %v552, %v556
    %v561 = vsel %vm560, 1, 0
    %v562 = vadd.s32 %v552, %v556
    %v563 = vadd.s32 %v555, %v561
    %vm564 = vc.u32 %v562, %v558
    %v565 = vsel %vm564, 1, 0
    %v566 = vadd.s32 %v562, %v558
    %v567 = vadd.s32 %v563, %v565
    %v568 = vadd.s32 %v567, %v557
    %v569 = vadd.s32 %v568, %v559
    %v570 = vand.u32 %v547, 65535
    %v571 = vshrl.u32 %v547, 16
    %v572 = vand.u32 %v542, 65535
    %v573 = vshrl.u32 %v542, 16
    %v574 = vmul.u32 %v570, %v572
    %v575 = vmul.u32 %v570, %v573
    %v576 = vmul.u32 %v571, %v572
    %v577 = vmul.u32 %v571, %v573
    %v578 = vshll.u32 %v575, 16
    %v579 = vshrl.u32 %v575, 16
    %v580 = vshll.u32 %v576, 16
    %v581 = vshrl.u32 %v576, 16
    %vm582 = vc.u32 %v574, %v578
    %v583 = vsel %vm582, 1, 0
    %v584 = vadd.s32 %v574, %v578
    %v585 = vadd.s32 %v577, %v583
    %vm586 = vc.u32 %v584, %v580
    %v587 = vsel %vm586, 1, 0
    %v588 = vadd.s32 %v584, %v580
    %v589 = vadd.s32 %v585, %v587
    %v590 = vadd.s32 %v589, %v579
    %v591 = vadd.s32 %v590, %v581
    %v592 = vmul.u32 %v547, %v538
    %v593 = vadd.s32 %v569, %v588
    %vm594 = vc.u32 %v569, %v588
    %v595 = vadd.s32 %v591, 1
    %v596 = vsel %vm594, %v595, %v591
    %v597 = vadd.s32 %v592, %v596
    %v598 = vadd.s32 %v597, 536870912
    %v599 = vshrl.u32 %v598, 30
    %v600 = vshll.u32 %v599, 30
    %v601 = vsub.s32 %v597, %v600
    %vm602 = vcmp.lt.s32.totalorder %v601, 0
    %v603 = vsub.s32 0, %v601
    %v604 = vsel %vm602, %v603, %v601
    %v605 = vclz %v604
    %v606 = vsub.s32 %v605, 2
    %vm607 = vcmp.gt.s32.totalorder 0, %v606
    %v608 = vsel %vm607, 0, %v606
    %v609 = vsub.s32 32, %v608
    %v610 = vshll.u32 %v601, %v608
    %v611 = vshrl.u32 %v593, %v609
    %v612 = vor.u32 %v610, %v611
    %v613 = vsub.s32 4294967266, %v608
    %v614 = vadd.s32 %v613, 127
    %v615 = vshll.u32 %v614, 23
    %v616 = vor.u32 4788187, %v615
    %v617 = vand.u32 2147483647, %v616
    %v619 = vcvt.s32.f32 %v612
    %v620 = vmul.f32 %v619, %v617
    %v621 = vxor.u32 %v620, 2147483648
    %v622 = vsel %vm501, %v621, %v620
    %v623 = vsub.s32 4, %v599
    %v624 = vsel %vm501, %v623, %v599
    %v625 = vsel %vm500, %v29, %v622
    %v626 = vsel %vm500, 0, %v624
    %v627 = vmul.f32 %v625, %v625
    %v628 = vmul.f32 %v627, -0.001358992
    %v629 = vadd.f32 %v628, 0.041655596
    %v630 = vmul.f32 %v627, %v629
    %v631 = vadd.f32 %v630, -0.4999988
    %v632 = vmul.f32 %v627, %v631
    %v633 = vadd.f32 1.0, %v632
    %v634 = vmul.f32 %v625, %v625
    %v635 = vmul.f32 %v634, -0.00019511016
    %v636 = vadd.f32 %v635, 0.008332121
    %v637 = vmul.f32 %v634, %v636
    %v638 = vadd.f32 %v637, -0.16666654
    %v639 = vmul.f32 %v634, %v638
    %v640 = vadd.f32 %v639, 1.0
    %v641 = vmul.f32 %v640, %v625
    %vm642 = vweird.f32 %v29
    %v643 = vand.u32 %v626, 3
    %vm644 = vcmp.lt.s32.totalorder %v643, 2
    %vm645 = vcmp.eq.s32.totalorder %v643, 0
    %v646 = vxor.u32 %v641, 2147483648
    %v647 = vsel %vm645, %v633, %v646
    %vm648 = vcmp.eq.s32.totalorder %v643, 2
    %v649 = vxor.u32 %v633, 2147483648
    %v650 = vsel %vm648, %v649, %v641
    %v651 = vsel %vm644, %v647, %v650
    %v652 = vsel %vm642, nan, %v651
    %v653 = vsel %vm343, 1, 0
    %v654 = vsel %vm344, 1, 0
    %655 = vset.pattern.permute.xlu0 0
    %656 = vperm.xlu0 %655, %v653
    %v657 = vpop.permute.xlu0 %656
    %658 = vset.pattern.permute.xlu0 0
    %659 = vperm.xlu0 %658, %v654
    %v660 = vpop.permute.xlu0 %659
    %vm661 = vcmp.eq.s32.totalorder %v657, 1
    %vm662 = vcmp.eq.s32.totalorder %v660, 1
    %v663 = vsel %vm661, %v498, 0.0
    %v664 = vsel %vm662, %v652, 0.0
    %667 = vrot.lane.b32.xlu0 %v663, 16
    %v668 = vpop.permute.xlu0 %667
    %669 = vrot.lane.b32.xlu0 %v664, 16
    %v670 = vpop.permute.xlu0 %669
    %vm673 = vcmask 261248
    %674 = vst.msk [vmem:[#allocation2] sm:$0xff] %vm673, %v668
    %675 = vst.msk [vmem:[#allocation2 + $0x8] sm:$0xff] %vm673, %v670
    // Predicated region
    $region10: #{tpu_custom_call.1} parent=1 // pred_check
      _
    $region11: #{tpu_custom_call.1} parent=1 // pred_check_branch
      %677 = sbr.rel (0) target = $region13
    $region12: #{tpu_custom_call.1} parent=1 // pred_region
      %679 = vsyncadd [#allocation3], 0
      %s680 = sshll.u32 [#allocation2], 4
      %s681 = int_to_ptr.vmem [resolvable:$true] %s680
      %s682 = sshll.u32 %s2, 4
      %s683 = int_to_ptr.hbm [resolvable:$true] %s682
      %688 = dma.vmem_to_hbm [thread:$0]  %s681, 256, %s683, [#allocation3], 128, 128, 8
    $region13: #{tpu_custom_call.1} parent=1 // pred_fallthru
      _
    // Predicated region
    $region14: #{tpu_custom_call.1} parent=1 // pred_check
      _
    $region15: #{tpu_custom_call.1} parent=1 // pred_check_branch
      %690 = sbr.rel (0) target = $region17
    $region16: #{tpu_custom_call.1} parent=1 // pred_region
      %692 = dma.done [#allocation3], 256
    $region17: #{tpu_custom_call.1} parent=1 // pred_fallthru
      _
    %693 = vsyncpa [#allocation3], 1

</llo_original>
